<compile_context>
chip_gen: v7x
topology: tpu7x:2x2x1
jax: 0.10.0
libtpu: 0.0.40
codegen_flags: <defaults>
</compile_context>

<pallas_src>
import functools

import jax
import jax.numpy as jnp
from jax.experimental import pallas as pl
from jax.experimental.pallas import tpu as pltpu


def _cdiv(a, b):
    return (a + b - 1) // b


def _round_up(x, m):
    return ((x + m - 1) // m) * m


def _largest_divisor_leq(n, cap):
    cap = max(1, min(n, cap))
    for d in range(cap, 0, -1):
        if n % d == 0:
            return d
    return 1


def _kd_loss_kernel(s_ref, t_ref, o_ref, *, inv_temp, hw, hw_tile, need_mask):
    # s_ref / t_ref: (n_block, C, hw_tile) tiles; softmax over axis=1 (channels).
    s = s_ref[...].astype(jnp.float32) * inv_temp
    t = t_ref[...].astype(jnp.float32) * inv_temp

    # Student log-softmax over channels (one per-element exp).
    s_shift = s - jnp.max(s, axis=1, keepdims=True)
    log_z_s = jnp.log(jnp.sum(jnp.exp(s_shift), axis=1, keepdims=True))

    # Teacher: reuse e_t for both the partition sum and p_t; p_t via exact
    # per-column reciprocal broadcast (removes the 3rd per-element exp so the
    # single EUP slot cannot become the binding unit).
    t_shift = t - jnp.max(t, axis=1, keepdims=True)
    e_t = jnp.exp(t_shift)
    z_t = jnp.sum(e_t, axis=1, keepdims=True)
    log_z_t = jnp.log(z_t)
    p_t = e_t * (1.0 / z_t)

    # kl = p_t * (log_p_t - log_p_s). Where p_t underflows to 0 the product is
    # 0 * finite = 0, matching torch.nn.functional.kl_div xlogy semantics.
    kl = p_t * ((t_shift - s_shift) + (log_z_s - log_z_t))

    if need_mask:
        # The last HW tile overruns the array; Pallas does NOT zero OOB block
        # data, so zero those columns' contribution (columns are independent,
        # any NaN/Inf there cannot leak into valid columns).
        col = jax.lax.broadcasted_iota(jnp.int32, kl.shape, dimension=2)
        col = col + pl.program_id(1) * hw_tile
        kl = jnp.where(col < hw, kl, 0.0)

    # Fold lanes to a lane-dense (n_block, C, 128) partial with a pairwise VPU
    # add tree (no cross-lane XLU reduce, short dependency chain), then fold
    # the n_block axis with plain vreg adds -> (C, 128) per grid step.
    groups = [kl[:, :, g * 128:(g + 1) * 128] for g in range(hw_tile // 128)]
    while len(groups) > 1:
        nxt = [groups[i] + groups[i + 1] for i in range(0, len(groups) - 1, 2)]
        if len(groups) % 2:
            nxt.append(groups[-1])
        groups = nxt
    o_ref[...] = jnp.sum(groups[0], axis=0)


def distill_loss(student_pred, teacher_pred, *, temperature=1.0, loss_weight=1.0,
                 vmem_working_set_bytes=24 * 1024 * 1024):
    """KL distillation loss matching PyTorch DistillLoss.forward.

    student_pred, teacher_pred: (N, C, H, W) arrays (f32 or bf16; bf16 is
    streamed as-is and upcast in-kernel, halving HBM read traffic).
    Returns scalar float32:
        loss_weight * T^2 * sum(p_t * (log p_t - log p_s)) / N   (batchmean)
    """
    N, C, H, W = student_pred.shape
    HW = H * W

    # Metadata-only reshape: no padded HBM copies of the inputs.
    s = student_pred.reshape(N, C, HW)
    t = teacher_pred.reshape(N, C, HW)

    itemsize = jnp.dtype(student_pred.dtype).itemsize
    c_mem = _round_up(C, 8)  # sublane padding in VMEM

    # Working-set model per grid step (bytes per block element):
    #   2 inputs x 2 pipeline buffers x itemsize  +  ~8 block-sized f32 temps.
    bytes_per_elem = 2 * 2 * itemsize + 8 * 4
    elem_budget = max(c_mem * 128, vmem_working_set_bytes // bytes_per_elem)
    # TODO(synk): chunk the in-kernel kl/fold over ~512-lane slices to bound
    # the f32 intermediates and allow ~2-3x larger hw_tile under this budget.

    # Spatial tile: always a multiple of 128 lanes, capped by the budget and by
    # the 128-aligned spatial extent.
    hw_cover = _round_up(HW, 128)
    hw_tile = min(hw_cover, max(128, ((elem_budget // c_mem) // 128) * 128))
    num_hw_tiles = _cdiv(HW, hw_tile)

    # Batch blocking: for small feature maps fold several batch elements into
    # one block so per-grid-step overhead is amortized (n_block divides N).
    n_cap = max(1, elem_budget // (c_mem * hw_tile))
    n_block = _largest_divisor_leq(N, n_cap)
    num_n_blocks = N // n_block
    # Keep >= 2 grid steps when possible so megacore (v7x, 2 TCs) stays busy.
    if num_n_blocks * num_hw_tiles == 1 and N > 1:
        n_block = _largest_divisor_leq(N, max(1, (N + 1) // 2))
        num_n_blocks = N // n_block

    need_mask = (num_hw_tiles * hw_tile) != HW

    kernel = functools.partial(
        _kd_loss_kernel,
        inv_temp=1.0 / float(temperature),
        hw=HW, hw_tile=hw_tile, need_mask=need_mask)

    # Explicit VMEM limit (estimate + headroom, clamped below v7x's 64 MiB/TC).
    block_elems = n_block * c_mem * hw_tile
    vmem_est = (2 * 2 * block_elems * itemsize + 8 * block_elems * 4
                + 2 * c_mem * 128 * 4)
    vmem_limit = int(min(56 * 1024 * 1024,
                         max(32 * 1024 * 1024, int(vmem_est * 1.5))))

    partials = pl.pallas_call(
        kernel,
        out_shape=jax.ShapeDtypeStruct((num_n_blocks, num_hw_tiles, C, 128),
                                       jnp.float32),
        grid_spec=pltpu.PrefetchScalarGridSpec(
            num_scalar_prefetch=0,
            grid=(num_n_blocks, num_hw_tiles),
            in_specs=[
                pl.BlockSpec((n_block, C, hw_tile), lambda i, j: (i, 0, j)),
                pl.BlockSpec((n_block, C, hw_tile), lambda i, j: (i, 0, j)),
            ],
            out_specs=pl.BlockSpec((None, None, C, 128),
                                   lambda i, j: (i, j, 0, 0)),
        ),
        compiler_params=pltpu.CompilerParams(
            dimension_semantics=("parallel", "parallel"),
            vmem_limit_bytes=vmem_limit,
        ),
    )(s, t)

    final_scale = float(loss_weight) * float(temperature) ** 2 / float(N)
    return jnp.sum(partials) * final_scale


def _reference_distill_loss(student_pred, teacher_pred, temperature=1.0, loss_weight=1.0):
    N = student_pred.shape[0]
    s = student_pred.astype(jnp.float32) / temperature
    t = teacher_pred.astype(jnp.float32) / temperature
    log_p_s = jax.nn.log_softmax(s, axis=1)
    log_p_t = jax.nn.log_softmax(t, axis=1)
    p_t = jnp.exp(log_p_t)
    kl = p_t * (log_p_t - log_p_s)
    return loss_weight * (temperature ** 2) * jnp.sum(kl) / N


if __name__ == "__main__":
    key = jax.random.PRNGKey(0)
    k1, k2 = jax.random.split(key)

    N, C, H, W = 2, 4, 16, 16
    student = jax.random.normal(k1, (N, C, H, W), dtype=jnp.float32)
    teacher = jax.random.normal(k2, (N, C, H, W), dtype=jnp.float32)

    temperature = 2.0
    loss_weight = 0.5

    loss = distill_loss(student, teacher,
                        temperature=temperature, loss_weight=loss_weight)
    loss = jax.block_until_ready(loss)

    ref = _reference_distill_loss(student, teacher,
                                  temperature=temperature, loss_weight=loss_weight)
    ref = jax.block_until_ready(ref)

    assert jnp.allclose(loss, ref, rtol=1e-5, atol=1e-5), (loss, ref)
    print("KERNEL_OK")
</pallas_src>

<mosaic_0001>
module attributes {stable_mosaic.version = 11 : i64} {
  func.func @_kd_loss_kernel(%arg0: i32, %arg1: i32, %arg2: memref<1x4x256xf32, #tpu.memory_space<vmem>>, %arg3: memref<1x4x256xf32, #tpu.memory_space<vmem>>, %arg4: memref<1x1x4x128xf32, #tpu.memory_space<vmem>>) attributes {dimension_semantics = [#tpu.dimension_semantics<parallel>, #tpu.dimension_semantics<parallel>], iteration_bounds = array<i64: 2, 1>, scalar_prefetch = 0 : i64, scratch_operands = 0 : i64, tpu.core_type = #tpu.core_type<tc>, window_params = [{transform_indices = @transform_0, window_bounds = array<i64: 1, 4, 256>}, {transform_indices = @transform_1, window_bounds = array<i64: 1, 4, 256>}, {transform_indices = @transform_2, window_bounds = array<i64: 1, 1, 4, 128>}]} {
    %c0 = arith.constant 0 : index
    %c0_0 = arith.constant 0 : index
    %c0_1 = arith.constant 0 : index
    %0 = vector.load %arg2[%c0, %c0_0, %c0_1] : memref<1x4x256xf32, #tpu.memory_space<vmem>>, vector<1x4x256xf32>
    %cst = arith.constant 5.000000e-01 : f32
    %1 = vector.broadcast %cst : f32 to vector<1x4x256xf32>
    %2 = arith.mulf %0, %1 : vector<1x4x256xf32>
    %c0_2 = arith.constant 0 : index
    %c0_3 = arith.constant 0 : index
    %c0_4 = arith.constant 0 : index
    %3 = vector.load %arg3[%c0_2, %c0_3, %c0_4] : memref<1x4x256xf32, #tpu.memory_space<vmem>>, vector<1x4x256xf32>
    %cst_5 = arith.constant 5.000000e-01 : f32
    %4 = vector.broadcast %cst_5 : f32 to vector<1x4x256xf32>
    %5 = arith.mulf %3, %4 : vector<1x4x256xf32>
    %cst_6 = arith.constant dense<0xFF800000> : vector<1x256xf32>
    %6 = vector.multi_reduction <maximumf>, %2, %cst_6 [1] : vector<1x4x256xf32> to vector<1x256xf32>
    %7 = vector.shape_cast %6 : vector<1x256xf32> to vector<1x1x256xf32>
    %8 = vector.broadcast %7 : vector<1x1x256xf32> to vector<1x4x256xf32>
    %9 = arith.subf %2, %8 : vector<1x4x256xf32>
    %10 = math.exp %9 : vector<1x4x256xf32>
    %cst_7 = arith.constant dense<0.000000e+00> : vector<1x256xf32>
    %11 = vector.multi_reduction <add>, %10, %cst_7 [1] : vector<1x4x256xf32> to vector<1x256xf32>
    %12 = vector.shape_cast %11 : vector<1x256xf32> to vector<1x1x256xf32>
    %13 = math.log %12 : vector<1x1x256xf32>
    %cst_8 = arith.constant dense<0xFF800000> : vector<1x256xf32>
    %14 = vector.multi_reduction <maximumf>, %5, %cst_8 [1] : vector<1x4x256xf32> to vector<1x256xf32>
    %15 = vector.shape_cast %14 : vector<1x256xf32> to vector<1x1x256xf32>
    %16 = vector.broadcast %15 : vector<1x1x256xf32> to vector<1x4x256xf32>
    %17 = arith.subf %5, %16 : vector<1x4x256xf32>
    %18 = math.exp %17 : vector<1x4x256xf32>
    %cst_9 = arith.constant dense<0.000000e+00> : vector<1x256xf32>
    %19 = vector.multi_reduction <add>, %18, %cst_9 [1] : vector<1x4x256xf32> to vector<1x256xf32>
    %20 = vector.shape_cast %19 : vector<1x256xf32> to vector<1x1x256xf32>
    %21 = math.log %20 : vector<1x1x256xf32>
    %cst_10 = arith.constant 1.000000e+00 : f32
    %22 = vector.broadcast %cst_10 : f32 to vector<1x1x256xf32>
    %23 = arith.divf %22, %20 : vector<1x1x256xf32>
    %24 = vector.broadcast %23 : vector<1x1x256xf32> to vector<1x4x256xf32>
    %25 = arith.mulf %18, %24 : vector<1x4x256xf32>
    %26 = arith.subf %17, %9 : vector<1x4x256xf32>
    %27 = arith.subf %13, %21 : vector<1x1x256xf32>
    %28 = vector.broadcast %27 : vector<1x1x256xf32> to vector<1x4x256xf32>
    %29 = arith.addf %26, %28 : vector<1x4x256xf32>
    %30 = arith.mulf %25, %29 : vector<1x4x256xf32>
    %31 = vector.extract_strided_slice %30 {offsets = [0, 0, 0], sizes = [1, 4, 128], strides = [1, 1, 1]} : vector<1x4x256xf32> to vector<1x4x128xf32>
    %32 = vector.extract_strided_slice %30 {offsets = [0, 0, 128], sizes = [1, 4, 128], strides = [1, 1, 1]} : vector<1x4x256xf32> to vector<1x4x128xf32>
    %33 = arith.addf %31, %32 : vector<1x4x128xf32>
    %cst_11 = arith.constant dense<0.000000e+00> : vector<4x128xf32>
    %34 = vector.multi_reduction <add>, %33, %cst_11 [0] : vector<1x4x128xf32> to vector<4x128xf32>
    %c0_12 = arith.constant 0 : index
    %c0_13 = arith.constant 0 : index
    %c0_14 = arith.constant 0 : index
    %c0_15 = arith.constant 0 : index
    %35 = vector.load %arg4[%c0_12, %c0_13, %c0_14, %c0_15] : memref<1x1x4x128xf32, #tpu.memory_space<vmem>>, vector<1x1x4x128xf32>
    %36 = vector.shape_cast %35 : vector<1x1x4x128xf32> to vector<4x128xf32>
    %37 = vector.shape_cast %34 : vector<4x128xf32> to vector<1x1x4x128xf32>
    tpu.vector_store %arg4[%c0_12, %c0_13, %c0_14, %c0_15], %37 {strides = array<i32>} : memref<1x1x4x128xf32, #tpu.memory_space<vmem>>, vector<1x1x4x128xf32>,
    return
  }
  func.func @transform_0(%arg0: i32, %arg1: i32) -> (i32, i32, i32) {
    %c0_i32 = arith.constant 0 : i32
    %c0_i32_0 = arith.constant 0 : i32
    return %arg0, %c0_i32, %arg1 : i32, i32, i32
  }
  func.func @transform_1(%arg0: i32, %arg1: i32) -> (i32, i32, i32) {
    %c0_i32 = arith.constant 0 : i32
    %c0_i32_0 = arith.constant 0 : i32
    return %arg0, %c0_i32, %arg1 : i32, i32, i32
  }
  func.func @transform_2(%arg0: i32, %arg1: i32) -> (i32, i32, i32, i32) {
    %c0_i32 = arith.constant 0 : i32
    %c0_i32_0 = arith.constant 0 : i32
    %c0_i32_1 = arith.constant 0 : i32
    return %arg0, %arg1, %c0_i32, %c0_i32_0 : i32, i32, i32, i32
  }
}

</mosaic_0001>

<llo_original>
// kernel: tpu_custom_call.1
$region0: #{tpu_custom_call.1}
  #allocation0 [shape = 'u32[]', space=smem, size = 0x4, offset = 0x4, fixed_abs, tag = 'smem constant byte address 0x4 - core index']
  #allocation1 [shape = 'u32[144,128]{1,0:T(1,128)}', space=vmem, size = 0x12000, scoped, tag = 'internal scratch']
  %s0 = inlined_call_operand.hbm [shape: f32[2,4,256], index: 0, kind: input, shape index: {}]
  %s1 = inlined_call_operand.hbm [shape: f32[2,4,256], index: 1, kind: input, shape index: {}]
  %s2 = inlined_call_operand.hbm [shape: f32[2,1,4,128], index: 2, kind: output, shape index: {}]
  %s3 = sld [smem:[#allocation0]]
  $region49: #{tpu_custom_call.1} parent=0
    _
  %s5 = ssub.s32 1, %s3
  %s6 = scalar_select 0, %s5, %s3
  $region1: #{tpu_custom_call.1} parent=0
    #allocation2 [shape = 'u8[8192]{0}', space=vmem, size = 0x2000, scoped, tag = 'input window, operand 0']
    #allocation3 [shape = 's32[2]{0}', space=sflag, size = 0x8, scoped, tag = 'scoped memory for tpu_custom_call.1']
    #allocation4 [shape = 's32[2]{0}', space=sflag, size = 0x8, scoped, tag = 'scoped memory for tpu_custom_call.1']
    #allocation5 [shape = 'u8[8192]{0}', space=vmem, size = 0x2000, scoped, tag = 'input window, operand 1']
    #allocation6 [shape = 's32[2]{0}', space=sflag, size = 0x8, scoped, tag = 'scoped memory for tpu_custom_call.1']
    #allocation7 [shape = 'u8[4096]{0}', space=vmem, size = 0x1000, scoped, tag = 'output window, operand 0']
    %7 = vsyncpa [#allocation3], 0
    %s8 = scalar_lea.sflag [#allocation3], 1
    %9 = vsyncpa %s8, 0
    %10 = vsyncpa [#allocation6], 0
    %s11 = scalar_lea.sflag [#allocation6], 1
    %12 = vsyncpa %s11, 0
    %13 = vsyncpa [#allocation4], 0
    %s14 = scalar_lea.sflag [#allocation4], 1
    %15 = vsyncpa %s14, 0
    loop: start=0, step=1, limit=4
    $region2: #{tpu_custom_call.1} parent=1 // loop_pre_header
      _
    $region3: #{tpu_custom_call.1} parent=1 // loop_header
      %s17 = sphi 0, %s21
      %p18 = scmp.ge.s32.totalorder %s17, 4
      %s24 = sphi 0, %s36
      %s25 = sphi 0, %s32
      %s26 = sphi 0, %s24
      %s27 = sphi 0, %s25
      %s28 = sphi 0, %s26
      %s29 = sphi 0, %s27
      %s41 = sphi 0, %s43
      %s44 = sphi 0, %s41
      %s45 = sphi 0, %s44
      %s61 = sphi 0, %s45
      %s69 = sphi 0, %s71
      %s72 = sphi 0, %s69
      %s73 = sphi 0, %s72
      %s89 = sphi 0, %s73
      %s97 = sphi 0, %s99
      %s100 = sphi 0, %s97
      %s101 = sphi 0, %s100
      %s117 = sphi 0, %s101
    $region4: #{tpu_custom_call.1} parent=1 // loop_header_branch
      %20 = sbr.rel (%p18) target = $region8
    $region5: #{tpu_custom_call.1} parent=1 // loop_body
      %s22 = ssub.s32 %s17, 1
      %s23 = ssub.s32 %s17, 2
      %s30 = sadd.s32 1, %s25
      %p31 = scmp.ge.s32.totalorder %s30, 1
      %s32 = scalar_select %p31, 0, %s30
      %s33 = sadd.s32 1, %s24
      %s34 = scalar_select %p31, %s33, %s24
      %p35 = scmp.ge.s32.totalorder %s34, 2
      %s36 = scalar_select %p35, 0, %s34
      %s37 = ssub.s32 %s24, %s36
      %s38 = ssub.s32 %s25, %s32
      %s39 = sor.u32 %s37, %s38
      %p40 = scmp.eq.s32.totalorder %s39, 0
      %s42 = sadd.s32 %s41, 1
      %s43 = scalar_select %p40, %s41, %s42
      %p46 = pneg %p40
      %p47 = scmp.eq.s32.totalorder %s17, 1
      %p48 = por %p46, %p47
      %p49 = scmp.ne.s32.totalorder %s41, %s44
      %p50 = scmp.eq.s32.totalorder %s17, 0
      %p51 = por %p49, %p50
      %p52 = scmp.ne.s32.totalorder %s41, %s44
      %p53 = scmp.eq.s32.totalorder %s22, 1
      %p54 = por %p52, %p53
      %p55 = scmp.ne.s32.totalorder %s44, %s45
      %p56 = scmp.eq.s32.totalorder %s22, 0
      %p57 = por %p55, %p56
      %p58 = scmp.ne.s32.totalorder %s44, %s45
      %p59 = scmp.eq.s32.totalorder %s23, 1
      %p60 = por %p58, %p59
      %p62 = scmp.ne.s32.totalorder %s45, %s61
      %p63 = scmp.eq.s32.totalorder %s23, 0
      %p64 = por %p62, %p63
      %s65 = ssub.s32 %s24, %s36
      %s66 = ssub.s32 %s25, %s32
      %s67 = sor.u32 %s65, %s66
      %p68 = scmp.eq.s32.totalorder %s67, 0
      %s70 = sadd.s32 %s69, 1
      %s71 = scalar_select %p68, %s69, %s70
      %p74 = pneg %p68
      %p75 = scmp.eq.s32.totalorder %s17, 1
      %p76 = por %p74, %p75
      %p77 = scmp.ne.s32.totalorder %s69, %s72
      %p78 = scmp.eq.s32.totalorder %s17, 0
      %p79 = por %p77, %p78
      %p80 = scmp.ne.s32.totalorder %s69, %s72
      %p81 = scmp.eq.s32.totalorder %s22, 1
      %p82 = por %p80, %p81
      %p83 = scmp.ne.s32.totalorder %s72, %s73
      %p84 = scmp.eq.s32.totalorder %s22, 0
      %p85 = por %p83, %p84
      %p86 = scmp.ne.s32.totalorder %s72, %s73
      %p87 = scmp.eq.s32.totalorder %s23, 1
      %p88 = por %p86, %p87
      %p90 = scmp.ne.s32.totalorder %s73, %s89
      %p91 = scmp.eq.s32.totalorder %s23, 0
      %p92 = por %p90, %p91
      %s93 = ssub.s32 %s24, %s36
      %s94 = ssub.s32 %s25, %s32
      %s95 = sor.u32 %s93, %s94
      %p96 = scmp.eq.s32.totalorder %s95, 0
      %s98 = sadd.s32 %s97, 1
      %s99 = scalar_select %p96, %s97, %s98
      %p102 = pneg %p96
      %p103 = scmp.eq.s32.totalorder %s17, 1
      %p104 = por %p102, %p103
      %p105 = scmp.ne.s32.totalorder %s97, %s100
      %p106 = scmp.eq.s32.totalorder %s17, 0
      %p107 = por %p105, %p106
      %p108 = scmp.ne.s32.totalorder %s97, %s100
      %p109 = scmp.eq.s32.totalorder %s22, 1
      %p110 = por %p108, %p109
      %p111 = scmp.ne.s32.totalorder %s100, %s101
      %p112 = scmp.eq.s32.totalorder %s22, 0
      %p113 = por %p111, %p112
      %p114 = scmp.ne.s32.totalorder %s100, %s101
      %p115 = scmp.eq.s32.totalorder %s23, 1
      %p116 = por %p114, %p115
      %p118 = scmp.ne.s32.totalorder %s101, %s117
      %p119 = scmp.eq.s32.totalorder %s23, 0
      %p120 = por %p118, %p119
      %p121 = scmp.le.s32.totalorder 1, %s17
      %p122 = scmp.lt.s32.totalorder %s17, 3
      %p123 = pnand %p121, %p122
      %p124 = pneg %p123
      // Predicated region
      $region9: #{tpu_custom_call.1} parent=5 // pred_check
        _
      $region10: #{tpu_custom_call.1} parent=5 // pred_check_branch
        %126 = sbr.rel (%p123) target = $region12
      $region11: #{tpu_custom_call.1} parent=5 // pred_region
        %s127 = ssub.s32 %s17, 1
      $region12: #{tpu_custom_call.1} parent=5 // pred_fallthru
        _
      %p128 = scmp.lt.s32.totalorder %s17, 2
      // Predicated region
      $region13: #{tpu_custom_call.1} parent=5 // pred_check
        %p129 = pneg %p128
      $region14: #{tpu_custom_call.1} parent=5 // pred_check_branch
        %131 = sbr.rel (%p129) target = $region16
      $region15: #{tpu_custom_call.1} parent=5 // pred_region
        // Predicated region
        $region17: #{tpu_custom_call.1} parent=15 // pred_check
          %p132 = pneg %p51
        $region18: #{tpu_custom_call.1} parent=15 // pred_check_branch
          %134 = sbr.rel (%p132) target = $region20
        $region19: #{tpu_custom_call.1} parent=15 // pred_region
          %s135 = sand.u32 %s41, 1
          %s136 = scalar_lea.sflag [#allocation3], %s135
          %s137 = sand.u32 %s41, 1
          %s138 = smul.addr %s137, 8
          %s139 = scalar_lea.vmem [#allocation2], %s138
          %s140 = smul.u32 2, %s25
          %s142 = ssub.s32 128, 128
          %143 = vsyncadd %s136, %s142
          %s144 = smul.addr %s24, 2
          %s145 = sadd.s32 %s140, %s144
          %s146 = smul.addr %s145, 64
          %s147 = scalar_lea.hbm %s0, %s146
          %s149 = sshll.u32 %s139, 4
          %s150 = int_to_ptr.vmem [resolvable:$true] %s149
          %152 = dma.hbm_to_vmem [thread:$0]  %s147, 128, %s150, %s136
        $region20: #{tpu_custom_call.1} parent=15 // pred_fallthru
          _
        // Predicated region
        $region21: #{tpu_custom_call.1} parent=15 // pred_check
          %p153 = pneg %p79
        $region22: #{tpu_custom_call.1} parent=15 // pred_check_branch
          %155 = sbr.rel (%p153) target = $region24
        $region23: #{tpu_custom_call.1} parent=15 // pred_region
          %s156 = sand.u32 %s69, 1
          %s157 = scalar_lea.sflag [#allocation6], %s156
          %s158 = sand.u32 %s69, 1
          %s159 = smul.addr %s158, 8
          %s160 = scalar_lea.vmem [#allocation5], %s159
          %s161 = smul.u32 2, %s25
          %s163 = ssub.s32 128, 128
          %164 = vsyncadd %s157, %s163
          %s165 = smul.addr %s24, 2
          %s166 = sadd.s32 %s161, %s165
          %s167 = smul.addr %s166, 64
          %s168 = scalar_lea.hbm %s1, %s167
          %s170 = sshll.u32 %s160, 4
          %s171 = int_to_ptr.vmem [resolvable:$true] %s170
          %173 = dma.hbm_to_vmem [thread:$0]  %s168, 128, %s171, %s157
        $region24: #{tpu_custom_call.1} parent=15 // pred_fallthru
          _
      $region16: #{tpu_custom_call.1} parent=5 // pred_fallthru
        _
      %p174 = scmp.le.s32.totalorder 1, %s17
      %p175 = scmp.lt.s32.totalorder %s17, 3
      %p176 = pnand %p174, %p175
      %p177 = pneg %p176
      // Predicated region
      $region25: #{tpu_custom_call.1} parent=5 // pred_check
        _
      $region26: #{tpu_custom_call.1} parent=5 // pred_check_branch
        %179 = sbr.rel (%p176) target = $region28
      $region27: #{tpu_custom_call.1} parent=5 // pred_region
        %s180 = ssub.s32 %s17, 1
        %s181 = sand.u32 %s44, 1
        %s182 = scalar_lea.sflag [#allocation3], %s181
        %s183 = sand.u32 %s44, 1
        %s184 = smul.addr %s183, 8
        %s185 = scalar_lea.vmem [#allocation2], %s184
        // Predicated region
        $region29: #{tpu_custom_call.1} parent=27 // pred_check
          %p186 = pneg %p57
        $region30: #{tpu_custom_call.1} parent=27 // pred_check_branch
          %188 = sbr.rel (%p186) target = $region32
        $region31: #{tpu_custom_call.1} parent=27 // pred_region
          %189 = dma.done %s182, 128
        $region32: #{tpu_custom_call.1} parent=27 // pred_fallthru
          _
        %s190 = sand.u32 %s72, 1
        %s191 = scalar_lea.sflag [#allocation6], %s190
        %s192 = sand.u32 %s72, 1
        %s193 = smul.addr %s192, 8
        %s194 = scalar_lea.vmem [#allocation5], %s193
        // Predicated region
        $region33: #{tpu_custom_call.1} parent=27 // pred_check
          %p195 = pneg %p85
        $region34: #{tpu_custom_call.1} parent=27 // pred_check_branch
          %197 = sbr.rel (%p195) target = $region36
        $region35: #{tpu_custom_call.1} parent=27 // pred_region
          %198 = dma.done %s191, 128
        $region36: #{tpu_custom_call.1} parent=27 // pred_fallthru
          _
        %s199 = sand.u32 %s44, 1
        %s200 = scalar_lea.sflag [#allocation3], %s199
        %s201 = sand.u32 %s44, 1
        %s202 = smul.addr %s201, 8
        %s203 = scalar_lea.vmem [#allocation2], %s202
        %p204 = pneg %p57
        %p205 = pneg %p54
        %s206 = sand.u32 %s72, 1
        %s207 = scalar_lea.sflag [#allocation6], %s206
        %s208 = sand.u32 %s72, 1
        %s209 = smul.addr %s208, 8
        %s210 = scalar_lea.vmem [#allocation5], %s209
        %p211 = pneg %p85
        %p212 = pneg %p82
        %p213 = pneg %p113
        %p214 = pneg %p110
        %s215 = sand.u32 %s100, 1
        %s216 = scalar_lea.sflag [#allocation4], %s215
        %s217 = sand.u32 %s100, 1
        %s218 = smul.addr %s217, 4
        %s219 = scalar_lea.vmem [#allocation7], %s218
        %s220 = smul.u32 2, %s27
        %s221 = smul.u32 2, %s27
        %v222 = vld [vmem:[%s185] sm:$0xff]
        %v223 = vmul.f32 %v222, 0.5
        %v224 = vld [vmem:[%s194] sm:$0xff]
        %v225 = vmul.f32 %v224, 0.5
        %v227 = vcombine.high %v223, %v223
        %vm229 = vcmask 1043456
        %v230 = vsel %vm229, %v223, -inf
        %v231 = vrot.slane %v230, 4
        %v232 = vmax.f32 %v230, %v231
        %v233 = vrot.slane %v232, 2
        %v234 = vmax.f32 %v232, %v233
        %v235 = vrot.slane %v234, 1
        %v236 = vmax.f32 %v234, %v235
        %v237 = vsel %vm229, %v227, -inf
        %v238 = vrot.slane %v237, 4
        %v239 = vmax.f32 %v237, %v238
        %v240 = vrot.slane %v239, 2
        %v241 = vmax.f32 %v239, %v240
        %v242 = vrot.slane %v241, 1
        %v243 = vmax.f32 %v241, %v242
        %v246 = vcombine.low %v236, %v243
        %v248 = vsub.f32 %v223, %v246
        %v249 = vmul.f32 %v248, 1.442695
        %v250 = vpow.pop %v249
        %v252 = vcombine.high %v250, %v250
        %v254 = vsel %vm229, %v250, 0.0
        %v255 = vrot.slane %v254, 4
        %v256 = vadd.f32 %v254, %v255
        %v257 = vrot.slane %v256, 2
        %v258 = vadd.f32 %v256, %v257
        %v259 = vrot.slane %v258, 1
        %v260 = vadd.f32 %v258, %v259
        %v261 = vsel %vm229, %v252, 0.0
        %v262 = vrot.slane %v261, 4
        %v263 = vadd.f32 %v261, %v262
        %v264 = vrot.slane %v263, 2
        %v265 = vadd.f32 %v263, %v264
        %v266 = vrot.slane %v265, 1
        %v267 = vadd.f32 %v265, %v266
        %v268 = vlog2.pop %v260
        %v269 = vmul.f32 %v268, 0.6931472
        %v270 = vlog2.pop %v267
        %v271 = vmul.f32 %v270, 0.6931472
        %v273 = vcombine.high %v225, %v225
        %v275 = vsel %vm229, %v225, -inf
        %v276 = vrot.slane %v275, 4
        %v277 = vmax.f32 %v275, %v276
        %v278 = vrot.slane %v277, 2
        %v279 = vmax.f32 %v277, %v278
        %v280 = vrot.slane %v279, 1
        %v281 = vmax.f32 %v279, %v280
        %v282 = vsel %vm229, %v273, -inf
        %v283 = vrot.slane %v282, 4
        %v284 = vmax.f32 %v282, %v283
        %v285 = vrot.slane %v284, 2
        %v286 = vmax.f32 %v284, %v285
        %v287 = vrot.slane %v286, 1
        %v288 = vmax.f32 %v286, %v287
        %v291 = vcombine.low %v281, %v288
        %v293 = vsub.f32 %v225, %v291
        %v294 = vmul.f32 %v293, 1.442695
        %v295 = vpow.pop %v294
        %v297 = vcombine.high %v295, %v295
        %v299 = vsel %vm229, %v295, 0.0
        %v300 = vrot.slane %v299, 4
        %v301 = vadd.f32 %v299, %v300
        %v302 = vrot.slane %v301, 2
        %v303 = vadd.f32 %v301, %v302
        %v304 = vrot.slane %v303, 1
        %v305 = vadd.f32 %v303, %v304
        %v306 = vsel %vm229, %v297, 0.0
        %v307 = vrot.slane %v306, 4
        %v308 = vadd.f32 %v306, %v307
        %v309 = vrot.slane %v308, 2
        %v310 = vadd.f32 %v308, %v309
        %v311 = vrot.slane %v310, 1
        %v312 = vadd.f32 %v310, %v311
        %v313 = vlog2.pop %v305
        %v314 = vmul.f32 %v313, 0.6931472
        %v315 = vlog2.pop %v312
        %v316 = vmul.f32 %v315, 0.6931472
        %v317 = vrcp.pop %v305
        %v318 = vmul.f32 1.0, %v317
        %v319 = vrcp.pop %v312
        %v320 = vmul.f32 1.0, %v319
        %v323 = vcombine.low %v318, %v320
        %v325 = vmul.f32 %v295, %v323
        %v326 = vsub.f32 %v293, %v248
        %v327 = vsub.f32 %v269, %v314
        %v328 = vsub.f32 %v271, %v316
        %v331 = vcombine.low %v327, %v328
        %v333 = vadd.f32 %v326, %v331
        %v334 = vmul.f32 %v325, %v333
        %v336 = vrot.slane %v334, 4
        %v338 = vadd.f32 %v334, %v336
        %v339 = vadd.f32 %v338, 0.0
        %340 = vst [vmem:[%s219] sm:$0xf] %v339
        %s341 = sand.u32 %s100, 1
        %s342 = scalar_lea.sflag [#allocation4], %s341
        %s343 = sand.u32 %s100, 1
        %s344 = smul.addr %s343, 4
        %s345 = scalar_lea.vmem [#allocation7], %s344
        // Predicated region
        $region37: #{tpu_custom_call.1} parent=27 // pred_check
          %p346 = pneg %p110
        $region38: #{tpu_custom_call.1} parent=27 // pred_check_branch
          %348 = sbr.rel (%p346) target = $region40
        $region39: #{tpu_custom_call.1} parent=27 // pred_region
          %s350 = ssub.s32 64, 64
          %351 = vsyncadd %s342, %s350
          %s352 = sadd.s32 %s27, %s26
          %s353 = smul.addr %s352, 64
          %s354 = scalar_lea.hbm %s2, %s353
          %s356 = sshll.u32 %s345, 4
          %s357 = int_to_ptr.vmem [resolvable:$true] %s356
          %359 = dma.vmem_to_hbm [thread:$0]  %s357, 64, %s354, %s342
        $region40: #{tpu_custom_call.1} parent=27 // pred_fallthru
          _
      $region28: #{tpu_custom_call.1} parent=5 // pred_fallthru
        _
      %p360 = scmp.le.s32.totalorder 2, %s17
      // Predicated region
      $region41: #{tpu_custom_call.1} parent=5 // pred_check
        %p361 = pneg %p360
      $region42: #{tpu_custom_call.1} parent=5 // pred_check_branch
        %363 = sbr.rel (%p361) target = $region44
      $region43: #{tpu_custom_call.1} parent=5 // pred_region
        %s364 = ssub.s32 %s17, 2
        // Predicated region
        $region45: #{tpu_custom_call.1} parent=43 // pred_check
          %p365 = pneg %p116
        $region46: #{tpu_custom_call.1} parent=43 // pred_check_branch
          %367 = sbr.rel (%p365) target = $region48
        $region47: #{tpu_custom_call.1} parent=43 // pred_region
          %s368 = sand.u32 %s101, 1
          %s369 = scalar_lea.sflag [#allocation4], %s368
          %s370 = sand.u32 %s101, 1
          %s371 = smul.addr %s370, 4
          %s372 = scalar_lea.vmem [#allocation7], %s371
          %373 = dma.done %s369, 64
        $region48: #{tpu_custom_call.1} parent=43 // pred_fallthru
          _
      $region44: #{tpu_custom_call.1} parent=5 // pred_fallthru
        _
    $region6: #{tpu_custom_call.1} parent=1 // loop_footer
      %s21 = sadd.s32 1, %s17
    $region7: #{tpu_custom_call.1} parent=1 // loop_footer_branch
      %16 = sbr.rel target = $region3
    $region8: #{tpu_custom_call.1} parent=1 // loop_exit
      _
    %374 = vsyncpa [#allocation3], 1
    %s375 = scalar_lea.sflag [#allocation3], 1
    %376 = vsyncpa %s375, 1
    %377 = vsyncpa [#allocation6], 1
    %s378 = scalar_lea.sflag [#allocation6], 1
    %379 = vsyncpa %s378, 1
    %380 = vsyncpa [#allocation4], 1
    %s381 = scalar_lea.sflag [#allocation4], 1
    %382 = vsyncpa %s381, 1

</llo_original>
